<compile_context>
chip_gen: v6e
topology: v6e:2x2x1
jax: 0.10.0
libtpu: 0.0.40
codegen_flags: <defaults>
</compile_context>

<pallas_src>
import jax
import jax.numpy as jnp
from jax.experimental import pallas as pl
from jax.experimental.pallas import tpu as pltpu


def _mlp_kernel(x_ref,
                w1_ref, b1_ref,
                w2_ref, b2_ref,
                w3_ref, b3_ref,
                w4_ref, b4_ref,
                o_ref):
    """Full forward pass for one batch tile, entirely in VMEM.

    x_ref   : [bt, n_fields] f32 (natural HBM layout; transposed in-VMEM)
    w1..w3  : [out, in] (bf16 or f32), b1..b3: [out, 1] f32
    w4_ref  : [hidden, 1] f32, b4_ref: [1, 1] f32
    o_ref   : [1, bt] f32 (lane-dense, batch on lanes)
    """
    mm_dtype = w1_ref.dtype  # bf16 (default) or f32

    # Fold the former host-side transpose into the kernel: XLU flip of the f32 tile,
    # then cast activations to the matmul dtype for the MXU.
    xt = jnp.transpose(x_ref[...])                                    # [n_fields, bt]

    h = jnp.dot(w1_ref[...], xt.astype(mm_dtype),
                preferred_element_type=jnp.float32)                   # [hidden, bt]
    h = jnp.maximum(h + b1_ref[...], 0.0)

    h = jnp.dot(w2_ref[...], h.astype(mm_dtype),
                preferred_element_type=jnp.float32)
    h = jnp.maximum(h + b2_ref[...], 0.0)

    h = jnp.dot(w3_ref[...], h.astype(mm_dtype),
                preferred_element_type=jnp.float32)
    h = jnp.maximum(h + b3_ref[...], 0.0)

    # Final Linear(hidden -> 1): VPU elementwise + sublane reduce (XLU), not an N=1 MXU op.
    out = jnp.sum(h * w4_ref[...], axis=0, keepdims=True) + b4_ref[...]   # [1, bt]
    o_ref[...] = out.astype(o_ref.dtype)


def energy_model_forward(x, params, *, batch_tile=8192, use_bf16=True):
    """x: [B, n_fields] float32; params PyTorch layout: w_i [out, in], b_i [out, 1].

    batch_tile: lanes per grid step (multiple of 128); sweep 8192..32768 for large B.
    use_bf16:   cast the three hidden-layer weights (and matmul activations) to bf16.
    """
    w1, b1, w2, b2, w3, b3, w4, b4 = params
    B, n_fields = x.shape
    hidden = w1.shape[0]
    assert batch_tile % 128 == 0, "batch_tile must be a multiple of 128"

    x = x.astype(jnp.float32)

    # ---- batch tiling (batch maps to lanes inside the kernel) -------------------
    if B >= 128:
        # Multiple-of-128 tile, no host-side pad/transpose of x.  The last block may
        # be partial (out-of-range rows read as padding; those lanes are discarded).
        bt = min(batch_tile, (B // 128) * 128)
        b_in = B
    else:
        # Tiny batch: one sublane-aligned block covering everything (negligible pad).
        bt = -(-B // 8) * 8
        b_in = bt
        if b_in != B:
            x = jnp.pad(x, ((0, b_in - B), (0, 0)))
    grid_b = pl.cdiv(b_in, bt)
    padded_out = grid_b * bt   # tiny, output-only padding; no extra x traffic

    # ---- parameter prep ----------------------------------------------------------
    mm_dtype = jnp.bfloat16 if use_bf16 else jnp.float32
    w1m = w1.astype(mm_dtype)
    w2m = w2.astype(mm_dtype)
    w3m = w3.astype(mm_dtype)
    b1f = b1.astype(jnp.float32)
    b2f = b2.astype(jnp.float32)
    b3f = b3.astype(jnp.float32)
    w4_col = jnp.reshape(w4, (hidden, 1)).astype(jnp.float32)   # column -> lane broadcast
    b4f = jnp.reshape(b4, (1, 1)).astype(jnp.float32)

    # Grid-invariant operands: full-array blocks, constant index_map (Pallas never
    # re-DMAs a block whose index does not change).  Single-buffer the big matmul
    # weights only once double-buffering them would cost real VMEM (v7x guardrail);
    # at hidden=32 the default double buffer is harmless.
    wbytes = 2 if use_bf16 else 4
    single_buffer_weights = 3 * hidden * hidden * wbytes * 2 > (8 << 20)

    def const_spec(arr, *, big_weight=False):
        nd = arr.ndim
        kwargs = {}
        if big_weight and single_buffer_weights:
            kwargs["pipeline_mode"] = pl.Buffered(1)
        return pl.BlockSpec(arr.shape, lambda i, _nd=nd: (0,) * _nd, **kwargs)

    in_specs = [
        pl.BlockSpec((bt, n_fields), lambda i: (i, 0)),     # x tile, natural layout
        const_spec(w1m, big_weight=True), const_spec(b1f),
        const_spec(w2m, big_weight=True), const_spec(b2f),
        const_spec(w3m, big_weight=True), const_spec(b3f),
        const_spec(w4_col), const_spec(b4f),
    ]
    out_spec = pl.BlockSpec((1, bt), lambda i: (0, i))      # lane-dense output

    out = pl.pallas_call(
        _mlp_kernel,
        out_shape=jax.ShapeDtypeStruct((1, padded_out), jnp.float32),
        grid_spec=pltpu.PrefetchScalarGridSpec(
            num_scalar_prefetch=0,
            grid=(grid_b,),
            in_specs=in_specs,
            out_specs=out_spec,
        ),
        compiler_params=pltpu.CompilerParams(
            dimension_semantics=("parallel",),
            # Explicit scoped-VMEM budget: above v5e's 16 MiB default, within
            # v6e/v7x defaults and v7x's 64 MiB physical VMEM.
            vmem_limit_bytes=32 * 1024 * 1024,
        ),
    )(x, w1m, b1f, w2m, b2f, w3m, b3f, w4_col, b4f)

    return jnp.reshape(out[0, :B], (B, 1))


def init_params(key, n_fields, hidden_size):
    """PyTorch nn.Linear-style init: w [out, in], b [out, 1], U(-1/sqrt(fan_in), 1/sqrt(fan_in))."""
    dims = [(hidden_size, n_fields),
            (hidden_size, hidden_size),
            (hidden_size, hidden_size),
            (1, hidden_size)]
    params = []
    for (fan_out, fan_in) in dims:
        key, kw, kb = jax.random.split(key, 3)
        bound = 1.0 / jnp.sqrt(jnp.float32(fan_in))
        w = jax.random.uniform(kw, (fan_out, fan_in), jnp.float32, -bound, bound)
        b = jax.random.uniform(kb, (fan_out, 1), jnp.float32, -bound, bound)
        params += [w, b]
    return tuple(params)


def _reference_forward(x, params):
    """Pure-JAX f32 reference of EnergyModel.forward (PyTorch-layout params)."""
    w1, b1, w2, b2, w3, b3, w4, b4 = params
    hi = jax.lax.Precision.HIGHEST
    h = jnp.maximum(jnp.dot(x, w1.T, precision=hi) + b1.T, 0.0)
    h = jnp.maximum(jnp.dot(h, w2.T, precision=hi) + b2.T, 0.0)
    h = jnp.maximum(jnp.dot(h, w3.T, precision=hi) + b3.T, 0.0)
    return jnp.dot(h, w4.T, precision=hi) + b4.T


if __name__ == "__main__":
    key = jax.random.PRNGKey(0)

    # Small shapes consistent with the module spec.
    B, n_fields, hidden = 8, 8, 32
    k_x, k_p, k_x2 = jax.random.split(key, 3)
    x = jax.random.normal(k_x, (B, n_fields), jnp.float32)
    params = init_params(k_p, n_fields, hidden)
    ref = _reference_forward(x, params)

    # f32-matmul path: tight check vs the f32 reference.
    out_f32 = jax.block_until_ready(energy_model_forward(x, params, use_bf16=False))
    assert out_f32.shape == (B, 1)
    assert jnp.allclose(out_f32, ref, atol=5e-3, rtol=5e-3), "mismatch vs reference (f32 path)"

    # Default (bf16 matmul) path: small numeric drift expected -> looser tolerance.
    out_bf16 = jax.block_until_ready(energy_model_forward(x, params))
    assert out_bf16.shape == (B, 1)
    assert jnp.allclose(out_bf16, ref, atol=3e-2, rtol=3e-2), "mismatch vs reference (bf16 path)"

    # Multi-tile pipelined path with a partial (non-dividing) last block.
    B2 = 300
    x2 = jax.random.normal(k_x2, (B2, n_fields), jnp.float32)
    ref2 = _reference_forward(x2, params)
    out2 = jax.block_until_ready(
        energy_model_forward(x2, params, batch_tile=128, use_bf16=False))
    assert out2.shape == (B2, 1)
    assert jnp.allclose(out2, ref2, atol=5e-3, rtol=5e-3), "mismatch vs reference (tiled batch)"

    print("KERNEL_OK")
</pallas_src>

<mosaic_0001>
module attributes {stable_mosaic.version = 11 : i64} {
  func.func @_mlp_kernel(%arg0: i32, %arg1: memref<8x8xf32, #tpu.memory_space<vmem>>, %arg2: memref<32x8xf32, #tpu.memory_space<vmem>>, %arg3: memref<32x1xf32, #tpu.memory_space<vmem>>, %arg4: memref<32x32xf32, #tpu.memory_space<vmem>>, %arg5: memref<32x1xf32, #tpu.memory_space<vmem>>, %arg6: memref<32x32xf32, #tpu.memory_space<vmem>>, %arg7: memref<32x1xf32, #tpu.memory_space<vmem>>, %arg8: memref<32x1xf32, #tpu.memory_space<vmem>>, %arg9: memref<1x1xf32, #tpu.memory_space<vmem>>, %arg10: memref<1x8xf32, #tpu.memory_space<vmem>>) attributes {dimension_semantics = [#tpu.dimension_semantics<parallel>], iteration_bounds = array<i64: 1>, scalar_prefetch = 0 : i64, scratch_operands = 0 : i64, tpu.core_type = #tpu.core_type<tc>, window_params = [{transform_indices = @transform_0, window_bounds = array<i64: 8, 8>}, {pipeline_mode = #tpu.pipeline_mode<synchronous>, transform_indices = @transform_1, window_bounds = array<i64: 32, 8>}, {pipeline_mode = #tpu.pipeline_mode<synchronous>, transform_indices = @transform_2, window_bounds = array<i64: 32, 1>}, {pipeline_mode = #tpu.pipeline_mode<synchronous>, transform_indices = @transform_3, window_bounds = array<i64: 32, 32>}, {pipeline_mode = #tpu.pipeline_mode<synchronous>, transform_indices = @transform_4, window_bounds = array<i64: 32, 1>}, {pipeline_mode = #tpu.pipeline_mode<synchronous>, transform_indices = @transform_5, window_bounds = array<i64: 32, 32>}, {pipeline_mode = #tpu.pipeline_mode<synchronous>, transform_indices = @transform_6, window_bounds = array<i64: 32, 1>}, {pipeline_mode = #tpu.pipeline_mode<synchronous>, transform_indices = @transform_7, window_bounds = array<i64: 32, 1>}, {pipeline_mode = #tpu.pipeline_mode<synchronous>, transform_indices = @transform_8, window_bounds = array<i64: 1, 1>}, {transform_indices = @transform_9, window_bounds = array<i64: 1, 8>}]} {
    %c0 = arith.constant 0 : index
    %c0_0 = arith.constant 0 : index
    %0 = vector.load %arg1[%c0, %c0_0] : memref<8x8xf32, #tpu.memory_space<vmem>>, vector<8x8xf32>
    %1 = tpu.transpose %0, [1, 0] : vector<8x8xf32> -> vector<8x8xf32>
    %c0_1 = arith.constant 0 : index
    %c0_2 = arith.constant 0 : index
    %2 = vector.load %arg2[%c0_1, %c0_2] : memref<32x8xf32, #tpu.memory_space<vmem>>, vector<32x8xf32>
    %cst = arith.constant dense<0.000000e+00> : vector<32x8xf32>
    %3 = tpu.matmul %2, %1, %cst {dimension_numbers = #tpu.dot_dimension_numbers<[1], [0], [0], [1], [0, 0, 1, 1], [], []>} : vector<32x8xf32>, vector<8x8xf32>, vector<32x8xf32> -> vector<32x8xf32>
    %c0_3 = arith.constant 0 : index
    %c0_4 = arith.constant 0 : index
    %4 = vector.load %arg3[%c0_3, %c0_4] : memref<32x1xf32, #tpu.memory_space<vmem>>, vector<32x1xf32>
    %5 = vector.broadcast %4 : vector<32x1xf32> to vector<32x8xf32>
    %6 = arith.addf %3, %5 : vector<32x8xf32>
    %cst_5 = arith.constant 0.000000e+00 : f32
    %7 = vector.broadcast %cst_5 : f32 to vector<32x8xf32>
    %8 = arith.maximumf %6, %7 : vector<32x8xf32>
    %c0_6 = arith.constant 0 : index
    %c0_7 = arith.constant 0 : index
    %9 = vector.load %arg4[%c0_6, %c0_7] : memref<32x32xf32, #tpu.memory_space<vmem>>, vector<32x32xf32>
    %cst_8 = arith.constant dense<0.000000e+00> : vector<32x8xf32>
    %10 = tpu.matmul %9, %8, %cst_8 {dimension_numbers = #tpu.dot_dimension_numbers<[1], [0], [0], [1], [0, 0, 1, 1], [], []>} : vector<32x32xf32>, vector<32x8xf32>, vector<32x8xf32> -> vector<32x8xf32>
    %c0_9 = arith.constant 0 : index
    %c0_10 = arith.constant 0 : index
    %11 = vector.load %arg5[%c0_9, %c0_10] : memref<32x1xf32, #tpu.memory_space<vmem>>, vector<32x1xf32>
    %12 = vector.broadcast %11 : vector<32x1xf32> to vector<32x8xf32>
    %13 = arith.addf %10, %12 : vector<32x8xf32>
    %cst_11 = arith.constant 0.000000e+00 : f32
    %14 = vector.broadcast %cst_11 : f32 to vector<32x8xf32>
    %15 = arith.maximumf %13, %14 : vector<32x8xf32>
    %c0_12 = arith.constant 0 : index
    %c0_13 = arith.constant 0 : index
    %16 = vector.load %arg6[%c0_12, %c0_13] : memref<32x32xf32, #tpu.memory_space<vmem>>, vector<32x32xf32>
    %cst_14 = arith.constant dense<0.000000e+00> : vector<32x8xf32>
    %17 = tpu.matmul %16, %15, %cst_14 {dimension_numbers = #tpu.dot_dimension_numbers<[1], [0], [0], [1], [0, 0, 1, 1], [], []>} : vector<32x32xf32>, vector<32x8xf32>, vector<32x8xf32> -> vector<32x8xf32>
    %c0_15 = arith.constant 0 : index
    %c0_16 = arith.constant 0 : index
    %18 = vector.load %arg7[%c0_15, %c0_16] : memref<32x1xf32, #tpu.memory_space<vmem>>, vector<32x1xf32>
    %19 = vector.broadcast %18 : vector<32x1xf32> to vector<32x8xf32>
    %20 = arith.addf %17, %19 : vector<32x8xf32>
    %cst_17 = arith.constant 0.000000e+00 : f32
    %21 = vector.broadcast %cst_17 : f32 to vector<32x8xf32>
    %22 = arith.maximumf %20, %21 : vector<32x8xf32>
    %c0_18 = arith.constant 0 : index
    %c0_19 = arith.constant 0 : index
    %23 = vector.load %arg8[%c0_18, %c0_19] : memref<32x1xf32, #tpu.memory_space<vmem>>, vector<32x1xf32>
    %24 = vector.broadcast %23 : vector<32x1xf32> to vector<32x8xf32>
    %25 = arith.mulf %22, %24 : vector<32x8xf32>
    %cst_20 = arith.constant dense<0.000000e+00> : vector<8xf32>
    %26 = vector.multi_reduction <add>, %25, %cst_20 [0] : vector<32x8xf32> to vector<8xf32>
    %27 = vector.shape_cast %26 : vector<8xf32> to vector<1x8xf32>
    %c0_21 = arith.constant 0 : index
    %c0_22 = arith.constant 0 : index
    %28 = vector.load %arg9[%c0_21, %c0_22] : memref<1x1xf32, #tpu.memory_space<vmem>>, vector<1x1xf32>
    %29 = vector.broadcast %28 : vector<1x1xf32> to vector<1x8xf32>
    %30 = arith.addf %27, %29 : vector<1x8xf32>
    %c0_23 = arith.constant 0 : index
    %c0_24 = arith.constant 0 : index
    %31 = vector.load %arg10[%c0_23, %c0_24] : memref<1x8xf32, #tpu.memory_space<vmem>>, vector<1x8xf32>
    tpu.vector_store %arg10[%c0_23, %c0_24], %30 {strides = array<i32>} : memref<1x8xf32, #tpu.memory_space<vmem>>, vector<1x8xf32>,
    return
  }
  func.func @transform_0(%arg0: i32) -> (i32, i32) {
    %c0_i32 = arith.constant 0 : i32
    %c0_i32_0 = arith.constant 0 : i32
    return %arg0, %c0_i32 : i32, i32
  }
  func.func @transform_1(%arg0: i32) -> (i32, i32) {
    %c0_i32 = arith.constant 0 : i32
    %c0_i32_0 = arith.constant 0 : i32
    %c0_i32_1 = arith.constant 0 : i32
    return %c0_i32, %c0_i32_0 : i32, i32
  }
  func.func @transform_2(%arg0: i32) -> (i32, i32) {
    %c0_i32 = arith.constant 0 : i32
    %c0_i32_0 = arith.constant 0 : i32
    %c0_i32_1 = arith.constant 0 : i32
    return %c0_i32, %c0_i32_0 : i32, i32
  }
  func.func @transform_3(%arg0: i32) -> (i32, i32) {
    %c0_i32 = arith.constant 0 : i32
    %c0_i32_0 = arith.constant 0 : i32
    %c0_i32_1 = arith.constant 0 : i32
    return %c0_i32, %c0_i32_0 : i32, i32
  }
  func.func @transform_4(%arg0: i32) -> (i32, i32) {
    %c0_i32 = arith.constant 0 : i32
    %c0_i32_0 = arith.constant 0 : i32
    %c0_i32_1 = arith.constant 0 : i32
    return %c0_i32, %c0_i32_0 : i32, i32
  }
  func.func @transform_5(%arg0: i32) -> (i32, i32) {
    %c0_i32 = arith.constant 0 : i32
    %c0_i32_0 = arith.constant 0 : i32
    %c0_i32_1 = arith.constant 0 : i32
    return %c0_i32, %c0_i32_0 : i32, i32
  }
  func.func @transform_6(%arg0: i32) -> (i32, i32) {
    %c0_i32 = arith.constant 0 : i32
    %c0_i32_0 = arith.constant 0 : i32
    %c0_i32_1 = arith.constant 0 : i32
    return %c0_i32, %c0_i32_0 : i32, i32
  }
  func.func @transform_7(%arg0: i32) -> (i32, i32) {
    %c0_i32 = arith.constant 0 : i32
    %c0_i32_0 = arith.constant 0 : i32
    %c0_i32_1 = arith.constant 0 : i32
    return %c0_i32, %c0_i32_0 : i32, i32
  }
  func.func @transform_8(%arg0: i32) -> (i32, i32) {
    %c0_i32 = arith.constant 0 : i32
    %c0_i32_0 = arith.constant 0 : i32
    %c0_i32_1 = arith.constant 0 : i32
    return %c0_i32, %c0_i32_0 : i32, i32
  }
  func.func @transform_9(%arg0: i32) -> (i32, i32) {
    %c0_i32 = arith.constant 0 : i32
    %c0_i32_0 = arith.constant 0 : i32
    return %c0_i32, %arg0 : i32, i32
  }
}

</mosaic_0001>

<llo_original>
// kernel: tpu_custom_call.1
$region0: #{tpu_custom_call.1}
  #allocation0 [shape = 'u32[]', space=smem, size = 0x4, offset = 0x4, fixed_abs, tag = 'smem constant byte address 0x4 - core index']
  #allocation1 [shape = 'u32[144,128]{1,0:T(1,128)}', space=vmem, size = 0x12000, scoped, tag = 'internal scratch']
  #allocation2 [shape = 'f32[1,1]{1,0:T(1,128)S(1)}', space=vmem, size = 0x200, scoped, tag = 'scoped memory for tpu_custom_call.1']
  %s0 = inlined_call_operand.vmem [shape: f32[8,8], index: 0, kind: input, shape index: {}]
  %s1 = inlined_call_operand.vmem [shape: f32[32,8], index: 1, kind: input, shape index: {}]
  %s2 = inlined_call_operand.vmem [shape: f32[32,1], index: 2, kind: input, shape index: {}]
  %s3 = inlined_call_operand.vmem [shape: f32[32,32], index: 3, kind: input, shape index: {}]
  %s4 = inlined_call_operand.vmem [shape: f32[32,1], index: 4, kind: input, shape index: {}]
  %s5 = inlined_call_operand.vmem [shape: f32[32,32], index: 5, kind: input, shape index: {}]
  %s6 = inlined_call_operand.vmem [shape: f32[32,1], index: 6, kind: input, shape index: {}]
  %s7 = inlined_call_operand.vmem [shape: f32[32,1], index: 7, kind: input, shape index: {}]
  %s8 = inlined_call_operand.<no memory space> [shape: f32[1,1], index: 8, kind: input, shape index: {}]
  %s9 = inlined_call_operand.hbm [shape: f32[1,8], index: 9, kind: output, shape index: {}]
  %s10 = sld [smem:[#allocation0]]
  $region46: #{tpu_custom_call.1} parent=0
    _
  %s12 = ssub.s32 1, %s10
  %s13 = scalar_select 0, %s12, %s10
  %v14 = vstv %s8
  %15 = vst [vmem:[#allocation2] sm:$0x1] %v14
  $region1: #{tpu_custom_call.1} parent=0
    #allocation3 [shape = 'u8[512]{0}', space=vmem, size = 0x400, scoped, tag = 'output window, operand 0, single buffered']
    #allocation4 [shape = 's32[1]{0}', space=sflag, size = 0x4, scoped, tag = 'scoped memory for tpu_custom_call.1']
    %16 = vsyncpa [#allocation4], 0
    // Predicated region
    $region2: #{tpu_custom_call.1} parent=1 // pred_check
      _
    $region3: #{tpu_custom_call.1} parent=1 // pred_check_branch
      %18 = sbr.rel (0) target = $region5
    $region4: #{tpu_custom_call.1} parent=1 // pred_region
      _
    $region5: #{tpu_custom_call.1} parent=1 // pred_fallthru
      _
    // Predicated region
    $region6: #{tpu_custom_call.1} parent=1 // pred_check
      _
    $region7: #{tpu_custom_call.1} parent=1 // pred_check_branch
      %20 = sbr.rel (0) target = $region9
    $region8: #{tpu_custom_call.1} parent=1 // pred_region
      _
    $region9: #{tpu_custom_call.1} parent=1 // pred_fallthru
      _
    // Predicated region
    $region10: #{tpu_custom_call.1} parent=1 // pred_check
      _
    $region11: #{tpu_custom_call.1} parent=1 // pred_check_branch
      %22 = sbr.rel (0) target = $region13
    $region12: #{tpu_custom_call.1} parent=1 // pred_region
      _
    $region13: #{tpu_custom_call.1} parent=1 // pred_fallthru
      _
    // Predicated region
    $region14: #{tpu_custom_call.1} parent=1 // pred_check
      _
    $region15: #{tpu_custom_call.1} parent=1 // pred_check_branch
      %24 = sbr.rel (0) target = $region17
    $region16: #{tpu_custom_call.1} parent=1 // pred_region
      _
    $region17: #{tpu_custom_call.1} parent=1 // pred_fallthru
      _
    // Predicated region
    $region18: #{tpu_custom_call.1} parent=1 // pred_check
      _
    $region19: #{tpu_custom_call.1} parent=1 // pred_check_branch
      %26 = sbr.rel (0) target = $region21
    $region20: #{tpu_custom_call.1} parent=1 // pred_region
      _
    $region21: #{tpu_custom_call.1} parent=1 // pred_fallthru
      _
    // Predicated region
    $region22: #{tpu_custom_call.1} parent=1 // pred_check
      _
    $region23: #{tpu_custom_call.1} parent=1 // pred_check_branch
      %28 = sbr.rel (0) target = $region25
    $region24: #{tpu_custom_call.1} parent=1 // pred_region
      _
    $region25: #{tpu_custom_call.1} parent=1 // pred_fallthru
      _
    // Predicated region
    $region26: #{tpu_custom_call.1} parent=1 // pred_check
      _
    $region27: #{tpu_custom_call.1} parent=1 // pred_check_branch
      %30 = sbr.rel (0) target = $region29
    $region28: #{tpu_custom_call.1} parent=1 // pred_region
      _
    $region29: #{tpu_custom_call.1} parent=1 // pred_fallthru
      _
    // Predicated region
    $region30: #{tpu_custom_call.1} parent=1 // pred_check
      _
    $region31: #{tpu_custom_call.1} parent=1 // pred_check_branch
      %32 = sbr.rel (0) target = $region33
    $region32: #{tpu_custom_call.1} parent=1 // pred_region
      _
    $region33: #{tpu_custom_call.1} parent=1 // pred_fallthru
      _
    // Predicated region
    $region34: #{tpu_custom_call.1} parent=1 // pred_check
      _
    $region35: #{tpu_custom_call.1} parent=1 // pred_check_branch
      %34 = sbr.rel (0) target = $region37
    $region36: #{tpu_custom_call.1} parent=1 // pred_region
      _
    $region37: #{tpu_custom_call.1} parent=1 // pred_fallthru
      _
    %v35 = vld [vmem:[%s0] sm:$0xff]
    %v36 = vld [vmem:[%s1] sm:$0xff]
    %v37 = vld [vmem:[%s1 + $0x8] sm:$0xff]
    %v38 = vld [vmem:[%s1 + $0x10] sm:$0xff]
    %v39 = vld [vmem:[%s1 + $0x18] sm:$0xff]
    %v40 = vld [vmem:[%s2] sm:$0xff]
    %v41 = vld [vmem:[%s2 + $0x8] sm:$0xff]
    %v42 = vld [vmem:[%s2 + $0x10] sm:$0xff]
    %v43 = vld [vmem:[%s2 + $0x18] sm:$0xff]
    %45 = vset.pattern.permute.xlu0 0
    %46 = vperm.xlu0 %45, %v40
    %v47 = vpop.permute.xlu0 %46
    %50 = vset.pattern.permute.xlu0 0
    %51 = vperm.xlu0 %50, %v41
    %v52 = vpop.permute.xlu0 %51
    %55 = vset.pattern.permute.xlu0 0
    %56 = vperm.xlu0 %55, %v42
    %v57 = vpop.permute.xlu0 %56
    %60 = vset.pattern.permute.xlu0 0
    %61 = vperm.xlu0 %60, %v43
    %v62 = vpop.permute.xlu0 %61
    %vm64 = vcmask 64512
    %v66 = vsel %vm64, %v36, 0
    %v69 = vsel %vm64, %v37, 0
    %v72 = vsel %vm64, %v38, 0
    %v75 = vsel %vm64, %v39, 0
    %v78 = vsel %vm64, %v35, 0
    %80 = vmatprep.subr.mxu0 0.0
    %81 = vmatpush1.xpose.msra.mxu0 0.0
    %82 = vmatprep.subr.mxu0 0.0
    %83 = vmatpush1.xpose.msra.mxu0 0.0
    %84 = vmatprep.subr.mxu0 0.0
    %85 = vmatpush1.xpose.msra.mxu0 0.0
    %86 = vmatprep.subr.mxu0 0.0
    %87 = vmatpush1.xpose.msra.mxu0 0.0
    %88 = vmatprep.subr.mxu0 0.0
    %89 = vmatpush1.xpose.msra.mxu0 0.0
    %90 = vmatprep.subr.mxu0 0.0
    %91 = vmatpush1.xpose.msra.mxu0 0.0
    %92 = vmatprep.subr.mxu0 0.0
    %93 = vmatpush1.xpose.msra.mxu0 0.0
    %94 = vmatprep.subr.mxu0 0.0
    %95 = vmatpush1.xpose.msra.mxu0 0.0
    %96 = vmatprep.subr.mxu0 0.0
    %97 = vmatpush1.xpose.msra.mxu0 0.0
    %98 = vmatprep.subr.mxu0 0.0
    %99 = vmatpush1.xpose.msra.mxu0 0.0
    %100 = vmatprep.subr.mxu0 0.0
    %101 = vmatpush1.xpose.msra.mxu0 0.0
    %102 = vmatprep.subr.mxu0 0.0
    %103 = vmatpush1.xpose.msra.mxu0 0.0
    %104 = vmatprep.subr.mxu0 0.0
    %105 = vmatpush1.xpose.msra.mxu0 0.0
    %106 = vmatprep.subr.mxu0 0.0
    %107 = vmatpush1.xpose.msra.mxu0 0.0
    %108 = vmatprep.subr.mxu0 0.0
    %109 = vmatpush1.xpose.msra.mxu0 0.0
    %110 = vmatprep.subr.mxu0 0.0
    %111 = vmatpush1.xpose.msra.mxu0 %v78
    %112 = vmatprep.subr.mxu0 0.0
    %113 = vmatpush2.xpose.msra.mxu0 0.0
    %114 = vmatprep.subr.mxu0 0.0
    %115 = vmatpush2.xpose.msra.mxu0 0.0
    %116 = vmatprep.subr.mxu0 0.0
    %117 = vmatpush2.xpose.msra.mxu0 0.0
    %118 = vmatprep.subr.mxu0 0.0
    %119 = vmatpush2.xpose.msra.mxu0 0.0
    %120 = vmatprep.subr.mxu0 0.0
    %121 = vmatpush2.xpose.msra.mxu0 0.0
    %122 = vmatprep.subr.mxu0 0.0
    %123 = vmatpush2.xpose.msra.mxu0 0.0
    %124 = vmatprep.subr.mxu0 0.0
    %125 = vmatpush2.xpose.msra.mxu0 0.0
    %126 = vmatprep.subr.mxu0 0.0
    %127 = vmatpush2.xpose.msra.mxu0 0.0
    %128 = vmatprep.subr.mxu0 0.0
    %129 = vmatpush2.xpose.msra.mxu0 0.0
    %130 = vmatprep.subr.mxu0 0.0
    %131 = vmatpush2.xpose.msra.mxu0 0.0
    %132 = vmatprep.subr.mxu0 0.0
    %133 = vmatpush2.xpose.msra.mxu0 0.0
    %134 = vmatprep.subr.mxu0 0.0
    %135 = vmatpush2.xpose.msra.mxu0 0.0
    %136 = vmatprep.subr.mxu0 0.0
    %137 = vmatpush2.xpose.msra.mxu0 0.0
    %138 = vmatprep.subr.mxu0 0.0
    %139 = vmatpush2.xpose.msra.mxu0 0.0
    %140 = vmatprep.subr.mxu0 0.0
    %141 = vmatpush2.xpose.msra.mxu0 0.0
    %142 = vmatprep.subr.mxu0 0.0
    %143 = vmatpush2.xpose.msra.mxu0 0.0
    %144 = vmatprep.mubr.f32.mxu0 0.0
    %145 = vmatmul.mubr.f32.gmra.mxu0 %v66
    %v146 = vpop.f32.mrf.mxu0
    %v147 = vadd.f32 %v47, %v146
    %v148 = vpop.f32.mrf.mxu0
    %149 = vmatprep.mubr.f32.mxu0 0.0
    %150 = vmatmul.mubr.f32.gmra.mxu0 %v69
    %v151 = vpop.f32.mrf.mxu0
    %v152 = vadd.f32 %v52, %v151
    %v153 = vpop.f32.mrf.mxu0
    %154 = vmatprep.mubr.f32.mxu0 0.0
    %155 = vmatmul.mubr.f32.gmra.mxu0 %v72
    %v156 = vpop.f32.mrf.mxu0
    %v157 = vadd.f32 %v57, %v156
    %v158 = vpop.f32.mrf.mxu0
    %159 = vmatprep.mubr.f32.mxu0 0.0
    %160 = vmatmul.mubr.f32.gmra.mxu0 %v75
    %v161 = vpop.f32.mrf.mxu0
    %v162 = vadd.f32 %v62, %v161
    %v163 = vpop.f32.mrf.mxu0
    %164 = vdwg.mxu0
    %v165 = vmax.f32 %v147, 0.0
    %v166 = vmax.f32 %v152, 0.0
    %v167 = vmax.f32 %v157, 0.0
    %v168 = vmax.f32 %v162, 0.0
    %v169 = vld [vmem:[%s3] sm:$0xff]
    %v170 = vld [vmem:[%s3 + $0x8] sm:$0xff]
    %v171 = vld [vmem:[%s3 + $0x10] sm:$0xff]
    %v172 = vld [vmem:[%s3 + $0x18] sm:$0xff]
    %v173 = vld [vmem:[%s4] sm:$0xff]
    %v174 = vld [vmem:[%s4 + $0x8] sm:$0xff]
    %v175 = vld [vmem:[%s4 + $0x10] sm:$0xff]
    %v176 = vld [vmem:[%s4 + $0x18] sm:$0xff]
    %178 = vset.pattern.permute.xlu0 0
    %179 = vperm.xlu0 %178, %v173
    %v180 = vpop.permute.xlu0 %179
    %183 = vset.pattern.permute.xlu0 0
    %184 = vperm.xlu0 %183, %v174
    %v185 = vpop.permute.xlu0 %184
    %188 = vset.pattern.permute.xlu0 0
    %189 = vperm.xlu0 %188, %v175
    %v190 = vpop.permute.xlu0 %189
    %193 = vset.pattern.permute.xlu0 0
    %194 = vperm.xlu0 %193, %v176
    %v195 = vpop.permute.xlu0 %194
    %vm197 = vcmask 261120
    %v199 = vsel %vm197, %v169, 0
    %v202 = vsel %vm197, %v170, 0
    %v205 = vsel %vm197, %v171, 0
    %v208 = vsel %vm197, %v172, 0
    %210 = vmatprep.subr.mxu0 0.0
    %211 = vmatpush1.msra.mxu0 0.0
    %212 = vmatprep.subr.mxu0 0.0
    %213 = vmatpush1.msra.mxu0 0.0
    %214 = vmatprep.subr.mxu0 0.0
    %215 = vmatpush1.msra.mxu0 0.0
    %216 = vmatprep.subr.mxu0 0.0
    %217 = vmatpush1.msra.mxu0 0.0
    %218 = vmatprep.subr.mxu0 0.0
    %219 = vmatpush1.msra.mxu0 0.0
    %220 = vmatprep.subr.mxu0 0.0
    %221 = vmatpush1.msra.mxu0 0.0
    %222 = vmatprep.subr.mxu0 0.0
    %223 = vmatpush1.msra.mxu0 0.0
    %224 = vmatprep.subr.mxu0 0.0
    %225 = vmatpush1.msra.mxu0 0.0
    %226 = vmatprep.subr.mxu0 0.0
    %227 = vmatpush1.msra.mxu0 0.0
    %228 = vmatprep.subr.mxu0 0.0
    %229 = vmatpush1.msra.mxu0 0.0
    %230 = vmatprep.subr.mxu0 0.0
    %231 = vmatpush1.msra.mxu0 0.0
    %232 = vmatprep.subr.mxu0 0.0
    %233 = vmatpush1.msra.mxu0 0.0
    %234 = vmatprep.subr.mxu0 0.0
    %235 = vmatpush1.msra.mxu0 %v168
    %236 = vmatprep.subr.mxu0 0.0
    %237 = vmatpush1.msra.mxu0 %v167
    %238 = vmatprep.subr.mxu0 0.0
    %239 = vmatpush1.msra.mxu0 %v166
    %240 = vmatprep.subr.mxu0 0.0
    %241 = vmatpush1.msra.mxu0 %v165
    %242 = vmatprep.subr.mxu0 0.0
    %243 = vmatpush2.msra.mxu0 0.0
    %244 = vmatprep.subr.mxu0 0.0
    %245 = vmatpush2.msra.mxu0 0.0
    %246 = vmatprep.subr.mxu0 0.0
    %247 = vmatpush2.msra.mxu0 0.0
    %248 = vmatprep.subr.mxu0 0.0
    %249 = vmatpush2.msra.mxu0 0.0
    %250 = vmatprep.subr.mxu0 0.0
    %251 = vmatpush2.msra.mxu0 0.0
    %252 = vmatprep.subr.mxu0 0.0
    %253 = vmatpush2.msra.mxu0 0.0
    %254 = vmatprep.subr.mxu0 0.0
    %255 = vmatpush2.msra.mxu0 0.0
    %256 = vmatprep.subr.mxu0 0.0
    %257 = vmatpush2.msra.mxu0 0.0
    %258 = vmatprep.subr.mxu0 0.0
    %259 = vmatpush2.msra.mxu0 0.0
    %260 = vmatprep.subr.mxu0 0.0
    %261 = vmatpush2.msra.mxu0 0.0
    %262 = vmatprep.subr.mxu0 0.0
    %263 = vmatpush2.msra.mxu0 0.0
    %264 = vmatprep.subr.mxu0 0.0
    %265 = vmatpush2.msra.mxu0 0.0
    %266 = vmatprep.subr.mxu0 0.0
    %267 = vmatpush2.msra.mxu0 0.0
    %268 = vmatprep.subr.mxu0 0.0
    %269 = vmatpush2.msra.mxu0 0.0
    %270 = vmatprep.subr.mxu0 0.0
    %271 = vmatpush2.msra.mxu0 0.0
    %272 = vmatprep.subr.mxu0 0.0
    %273 = vmatpush2.msra.mxu0 0.0
    %274 = vmatprep.mubr.f32.mxu0 0.0
    %275 = vmatmul.mubr.f32.gmra.mxu0 %v199
    %v276 = vpop.f32.mrf.mxu0
    %v277 = vadd.f32 %v180, %v276
    %v278 = vpop.f32.mrf.mxu0
    %279 = vmatprep.mubr.f32.mxu0 0.0
    %280 = vmatmul.mubr.f32.gmra.mxu0 %v202
    %v281 = vpop.f32.mrf.mxu0
    %v282 = vadd.f32 %v185, %v281
    %v283 = vpop.f32.mrf.mxu0
    %284 = vmatprep.mubr.f32.mxu0 0.0
    %285 = vmatmul.mubr.f32.gmra.mxu0 %v205
    %v286 = vpop.f32.mrf.mxu0
    %v287 = vadd.f32 %v190, %v286
    %v288 = vpop.f32.mrf.mxu0
    %289 = vmatprep.mubr.f32.mxu0 0.0
    %290 = vmatmul.mubr.f32.gmra.mxu0 %v208
    %v291 = vpop.f32.mrf.mxu0
    %v292 = vadd.f32 %v195, %v291
    %v293 = vpop.f32.mrf.mxu0
    %294 = vdwg.mxu0
    %v295 = vmax.f32 %v277, 0.0
    %v296 = vmax.f32 %v282, 0.0
    %v297 = vmax.f32 %v287, 0.0
    %v298 = vmax.f32 %v292, 0.0
    %v299 = vld [vmem:[%s5] sm:$0xff]
    %v300 = vld [vmem:[%s5 + $0x8] sm:$0xff]
    %v301 = vld [vmem:[%s5 + $0x10] sm:$0xff]
    %v302 = vld [vmem:[%s5 + $0x18] sm:$0xff]
    %v303 = vld [vmem:[%s6] sm:$0xff]
    %v304 = vld [vmem:[%s6 + $0x8] sm:$0xff]
    %v305 = vld [vmem:[%s6 + $0x10] sm:$0xff]
    %v306 = vld [vmem:[%s6 + $0x18] sm:$0xff]
    %308 = vset.pattern.permute.xlu0 0
    %309 = vperm.xlu0 %308, %v303
    %v310 = vpop.permute.xlu0 %309
    %313 = vset.pattern.permute.xlu0 0
    %314 = vperm.xlu0 %313, %v304
    %v315 = vpop.permute.xlu0 %314
    %318 = vset.pattern.permute.xlu0 0
    %319 = vperm.xlu0 %318, %v305
    %v320 = vpop.permute.xlu0 %319
    %323 = vset.pattern.permute.xlu0 0
    %324 = vperm.xlu0 %323, %v306
    %v325 = vpop.permute.xlu0 %324
    %v328 = vsel %vm197, %v299, 0
    %v331 = vsel %vm197, %v300, 0
    %v334 = vsel %vm197, %v301, 0
    %v337 = vsel %vm197, %v302, 0
    %339 = vmatprep.subr.mxu0 0.0
    %340 = vmatpush1.msra.mxu0 0.0
    %341 = vmatprep.subr.mxu0 0.0
    %342 = vmatpush1.msra.mxu0 0.0
    %343 = vmatprep.subr.mxu0 0.0
    %344 = vmatpush1.msra.mxu0 0.0
    %345 = vmatprep.subr.mxu0 0.0
    %346 = vmatpush1.msra.mxu0 0.0
    %347 = vmatprep.subr.mxu0 0.0
    %348 = vmatpush1.msra.mxu0 0.0
    %349 = vmatprep.subr.mxu0 0.0
    %350 = vmatpush1.msra.mxu0 0.0
    %351 = vmatprep.subr.mxu0 0.0
    %352 = vmatpush1.msra.mxu0 0.0
    %353 = vmatprep.subr.mxu0 0.0
    %354 = vmatpush1.msra.mxu0 0.0
    %355 = vmatprep.subr.mxu0 0.0
    %356 = vmatpush1.msra.mxu0 0.0
    %357 = vmatprep.subr.mxu0 0.0
    %358 = vmatpush1.msra.mxu0 0.0
    %359 = vmatprep.subr.mxu0 0.0
    %360 = vmatpush1.msra.mxu0 0.0
    %361 = vmatprep.subr.mxu0 0.0
    %362 = vmatpush1.msra.mxu0 0.0
    %363 = vmatprep.subr.mxu0 0.0
    %364 = vmatpush1.msra.mxu0 %v298
    %365 = vmatprep.subr.mxu0 0.0
    %366 = vmatpush1.msra.mxu0 %v297
    %367 = vmatprep.subr.mxu0 0.0
    %368 = vmatpush1.msra.mxu0 %v296
    %369 = vmatprep.subr.mxu0 0.0
    %370 = vmatpush1.msra.mxu0 %v295
    %371 = vmatprep.subr.mxu0 0.0
    %372 = vmatpush2.msra.mxu0 0.0
    %373 = vmatprep.subr.mxu0 0.0
    %374 = vmatpush2.msra.mxu0 0.0
    %375 = vmatprep.subr.mxu0 0.0
    %376 = vmatpush2.msra.mxu0 0.0
    %377 = vmatprep.subr.mxu0 0.0
    %378 = vmatpush2.msra.mxu0 0.0
    %379 = vmatprep.subr.mxu0 0.0
    %380 = vmatpush2.msra.mxu0 0.0
    %381 = vmatprep.subr.mxu0 0.0
    %382 = vmatpush2.msra.mxu0 0.0
    %383 = vmatprep.subr.mxu0 0.0
    %384 = vmatpush2.msra.mxu0 0.0
    %385 = vmatprep.subr.mxu0 0.0
    %386 = vmatpush2.msra.mxu0 0.0
    %387 = vmatprep.subr.mxu0 0.0
    %388 = vmatpush2.msra.mxu0 0.0
    %389 = vmatprep.subr.mxu0 0.0
    %390 = vmatpush2.msra.mxu0 0.0
    %391 = vmatprep.subr.mxu0 0.0
    %392 = vmatpush2.msra.mxu0 0.0
    %393 = vmatprep.subr.mxu0 0.0
    %394 = vmatpush2.msra.mxu0 0.0
    %395 = vmatprep.subr.mxu0 0.0
    %396 = vmatpush2.msra.mxu0 0.0
    %397 = vmatprep.subr.mxu0 0.0
    %398 = vmatpush2.msra.mxu0 0.0
    %399 = vmatprep.subr.mxu0 0.0
    %400 = vmatpush2.msra.mxu0 0.0
    %401 = vmatprep.subr.mxu0 0.0
    %402 = vmatpush2.msra.mxu0 0.0
    %403 = vmatprep.mubr.f32.mxu0 0.0
    %404 = vmatmul.mubr.f32.gmra.mxu0 %v328
    %v405 = vpop.f32.mrf.mxu0
    %v406 = vadd.f32 %v310, %v405
    %v407 = vpop.f32.mrf.mxu0
    %408 = vmatprep.mubr.f32.mxu0 0.0
    %409 = vmatmul.mubr.f32.gmra.mxu0 %v331
    %v410 = vpop.f32.mrf.mxu0
    %v411 = vadd.f32 %v315, %v410
    %v412 = vpop.f32.mrf.mxu0
    %413 = vmatprep.mubr.f32.mxu0 0.0
    %414 = vmatmul.mubr.f32.gmra.mxu0 %v334
    %v415 = vpop.f32.mrf.mxu0
    %v416 = vadd.f32 %v320, %v415
    %v417 = vpop.f32.mrf.mxu0
    %418 = vmatprep.mubr.f32.mxu0 0.0
    %419 = vmatmul.mubr.f32.gmra.mxu0 %v337
    %v420 = vpop.f32.mrf.mxu0
    %v421 = vadd.f32 %v325, %v420
    %v422 = vpop.f32.mrf.mxu0
    %423 = vdwg.mxu0
    %v424 = vmax.f32 %v406, 0.0
    %v425 = vmax.f32 %v411, 0.0
    %v426 = vmax.f32 %v416, 0.0
    %v427 = vmax.f32 %v421, 0.0
    %v428 = vld [vmem:[%s7] sm:$0xff]
    %v429 = vld [vmem:[%s7 + $0x8] sm:$0xff]
    %v430 = vld [vmem:[%s7 + $0x10] sm:$0xff]
    %v431 = vld [vmem:[%s7 + $0x18] sm:$0xff]
    %433 = vset.pattern.permute.xlu0 0
    %434 = vperm.xlu0 %433, %v428
    %v435 = vpop.permute.xlu0 %434
    %438 = vset.pattern.permute.xlu0 0
    %439 = vperm.xlu0 %438, %v429
    %v440 = vpop.permute.xlu0 %439
    %443 = vset.pattern.permute.xlu0 0
    %444 = vperm.xlu0 %443, %v430
    %v445 = vpop.permute.xlu0 %444
    %448 = vset.pattern.permute.xlu0 0
    %449 = vperm.xlu0 %448, %v431
    %v450 = vpop.permute.xlu0 %449
    %v452 = vmul.f32 %v424, %v435
    %v453 = vmul.f32 %v425, %v440
    %v454 = vmul.f32 %v426, %v445
    %v455 = vmul.f32 %v427, %v450
    %v456 = vsel %vm64, %v452, 0.0
    %v457 = vsel %vm64, %v453, 0.0
    %v458 = vadd.f32 %v456, %v457
    %v459 = vsel %vm64, %v454, 0.0
    %v460 = vadd.f32 %v458, %v459
    %v461 = vsel %vm64, %v455, 0.0
    %v462 = vadd.f32 %v460, %v461
    %v463 = vrot.slane %v462, 4
    %v464 = vadd.f32 %v462, %v463
    %v465 = vrot.slane %v464, 2
    %v466 = vadd.f32 %v464, %v465
    %v467 = vrot.slane %v466, 1
    %v468 = vadd.f32 %v466, %v467
    %v469 = vld [vmem:[#allocation2] sm:$0x1]
    %471 = vset.pattern.permute.xlu0 0
    %472 = vperm.xlu0 %471, %v469
    %v473 = vpop.permute.xlu0 %472
    %v475 = vlaneseq
    %v476 = vshrl.u32 %v475, 7
    %v477 = vsub.s32 0, %v476
    %v478 = vrot.slane %v473, %v477
    %v479 = vadd.f32 %v468, %v478
    %vm480 = vcmask 57344
    %481 = vst.msk [vmem:[#allocation3] sm:$0x1] %vm480, %v479
    // Predicated region
    $region38: #{tpu_custom_call.1} parent=1 // pred_check
      _
    $region39: #{tpu_custom_call.1} parent=1 // pred_check_branch
      %483 = sbr.rel (0) target = $region41
    $region40: #{tpu_custom_call.1} parent=1 // pred_region
      %s485 = ssub.s32 16, 16
      %486 = vsyncadd [#allocation4], %s485
      %s488 = sshll.u32 [#allocation3], 4
      %s489 = int_to_ptr.vmem [resolvable:$true] %s488
      %491 = dma.vmem_to_hbm [thread:$0]  %s489, 16, %s9, [#allocation4]
    $region41: #{tpu_custom_call.1} parent=1 // pred_fallthru
      _
    // Predicated region
    $region42: #{tpu_custom_call.1} parent=1 // pred_check
      _
    $region43: #{tpu_custom_call.1} parent=1 // pred_check_branch
      %493 = sbr.rel (0) target = $region45
    $region44: #{tpu_custom_call.1} parent=1 // pred_region
      %494 = dma.done [#allocation4], 16
    $region45: #{tpu_custom_call.1} parent=1 // pred_fallthru
      _
    %495 = vsyncpa [#allocation4], 1

</llo_original>
